<compile_context>
chip_gen: v7x
topology: tpu7x:2x2x1
jax: 0.10.0
libtpu: 0.0.40
codegen_flags: <defaults>
</compile_context>

<pallas_src>
import functools

import numpy as np
import jax
import jax.numpy as jnp
from jax.experimental import pallas as pl
from jax.experimental.pallas import tpu as pltpu


# --------------------------------------------------------------------------
# Plain-JAX glue: tiny 3x3 camera algebra (mirrors the torch module)
# --------------------------------------------------------------------------
def rodrigues_rotation(rvec):
    """Camera3DPoseRodriguesRotFormula.get_rotation_matrix: (1,3) -> (1,3,3)."""
    theta = jnp.linalg.norm(rvec, axis=-1, keepdims=True)             # (1,1)
    k = rvec / jnp.maximum(theta, 1e-12)                              # (1,3)
    kx, ky, kz = k[:, 0], k[:, 1], k[:, 2]
    zero = jnp.zeros_like(kx)
    K = jnp.stack(
        [jnp.stack([zero, -kz, ky], axis=-1),
         jnp.stack([kz, zero, -kx], axis=-1),
         jnp.stack([-ky, kx, zero], axis=-1)], axis=1)                # (1,3,3)
    s = jnp.sin(theta)[..., None]
    c = jnp.cos(theta)[..., None]
    eye = jnp.eye(3, dtype=rvec.dtype)[None]
    return eye + s * K + (1.0 - c) * (K @ K)


def _normalize(v, eps=1e-5):
    n = jnp.linalg.norm(v, axis=-1, keepdims=True)
    return v / jnp.maximum(n, eps)


def look_at_rotation(camera_position, at=(0.0, 0.0, 0.0), up=(0.0, 1.0, 0.0)):
    """pytorch3d.renderer.look_at_rotation for a batch of one camera."""
    at = jnp.asarray(at, camera_position.dtype)[None]
    up = jnp.asarray(up, camera_position.dtype)[None]
    z_axis = _normalize(at - camera_position)
    x_axis = _normalize(jnp.cross(up, z_axis))
    y_axis = _normalize(jnp.cross(z_axis, x_axis))
    is_close = jnp.all(jnp.abs(x_axis) < 5e-3, axis=1, keepdims=True)
    replacement = _normalize(jnp.cross(y_axis, z_axis))
    x_axis = jnp.where(is_close, replacement, x_axis)
    R = jnp.stack([x_axis[0], y_axis[0], z_axis[0]], axis=0)          # rows = axes
    return jnp.transpose(R)[None]                                     # (1,3,3) cols = axes


# --------------------------------------------------------------------------
# Pallas kernel: all per-point math + reductions of PoseModel.loss
# --------------------------------------------------------------------------
def _pose_loss_kernel(scal_ref, pairs_ref, ipts_ref, comps_ref):
    """scal_ref : SMEM (1, 8)
         [cc_x, cc_y, cc_z, 1/n_euclid, 1/n_normal, 1/(3*n_inter), 0, 0]
         cc = camera centre after camera.R <- look_at_rotation(...)^-1 (glue).
       pairs_ref: VMEM (16, Mpad) coordinate-major matched-pair data
         rows 0-2  world pts xyz | 3-5  current pts xyz  (NaN-sanitised)
         rows 6-8  world nrm xyz | 9-11 current nrm xyz  (NaN-sanitised)
         rows 12-14 per-element euclidean mask | row 15 per-pair normal mask
       ipts_ref : VMEM (4, Ipad) rows 0-2 intersection pts xyz, row 3 pad mask
       comps_ref: SMEM (1, 4)
         [euclid_loss, normal_loss, mean|ip|^2, mean|ip - cc|^2]
    """
    # ---- euclidean loss: masked mean of squared differences (VPU only) ----
    d0 = pairs_ref[0:1, :] - pairs_ref[3:4, :]
    d1 = pairs_ref[1:2, :] - pairs_ref[4:5, :]
    d2 = pairs_ref[2:3, :] - pairs_ref[5:6, :]
    e_sum = (d0 * d0 * pairs_ref[12:13, :]
             + d1 * d1 * pairs_ref[13:14, :]
             + d2 * d2 * pairs_ref[14:15, :])
    comps_ref[0, 0] = jnp.sum(e_sum) * scal_ref[0, 3]

    # ---- normal loss: masked mean of (1 - cosine similarity) --------------
    wnx = pairs_ref[6:7, :];  wny = pairs_ref[7:8, :];   wnz = pairs_ref[8:9, :]
    cnx = pairs_ref[9:10, :]; cny = pairs_ref[10:11, :]; cnz = pairs_ref[11:12, :]
    dot = wnx * cnx + wny * cny + wnz * cnz
    nw = jnp.sqrt(wnx * wnx + wny * wny + wnz * wnz)
    nc = jnp.sqrt(cnx * cnx + cny * cny + cnz * cnz)
    denom = jnp.maximum(nw, 1e-8) * jnp.maximum(nc, 1e-8)
    # EUP approximate reciprocal (review #4): the only per-lane division.
    cos = dot * pl.reciprocal(denom, approx=True)
    comps_ref[0, 1] = jnp.sum((1.0 - cos) * pairs_ref[15:16, :]) * scal_ref[0, 4]

    # ---- pull-out-mesh distances (mean-square terms; sqrt on scalars in glue)
    ipx = ipts_ref[0:1, :]; ipy = ipts_ref[1:2, :]; ipz = ipts_ref[2:3, :]
    im = ipts_ref[3:4, :]
    comps_ref[0, 2] = jnp.sum((ipx * ipx + ipy * ipy + ipz * ipz) * im) * scal_ref[0, 5]
    dx = ipx - scal_ref[0, 0]
    dy = ipy - scal_ref[0, 1]
    dz = ipz - scal_ref[0, 2]
    comps_ref[0, 3] = jnp.sum((dx * dx + dy * dy + dz * dz) * im) * scal_ref[0, 5]


def _pose_forward(r_param, t_param, pairs, ipts, *,
                  inv_euclid_count, inv_normal_count, inv_ip_elems,
                  weight_normal_loss):
    """Entire forward (camera algebra + one Pallas launch + scalar epilogue)."""
    R = rodrigues_rotation(r_param)                                   # (1,3,3)
    # pytorch3d camera centre: world-to-view x @ R + T  ->  C = -T @ R^T
    cam_center = -(t_param @ jnp.transpose(R[0]))                     # (1,3)
    R_pto = look_at_rotation(cam_center)                              # (1,3,3)
    # camera.R <- R_pto^-1 (= R_pto^T), so the new centre is -T @ R_pto
    cam_center_new = -(t_param @ R_pto[0])                            # (1,3)

    scal = jnp.concatenate([
        cam_center_new.reshape(3).astype(jnp.float32),
        jnp.array([inv_euclid_count, inv_normal_count, inv_ip_elems, 0.0, 0.0],
                  dtype=jnp.float32),
    ]).reshape(1, 8)

    comps = pl.pallas_call(
        _pose_loss_kernel,
        out_shape=jax.ShapeDtypeStruct((1, 4), jnp.float32),
        in_specs=[
            pl.BlockSpec(memory_space=pltpu.MemorySpace.SMEM),   # scalars (1,8)
            pl.BlockSpec(memory_space=pltpu.MemorySpace.VMEM),   # pairs   (16,Mpad)
            pl.BlockSpec(memory_space=pltpu.MemorySpace.VMEM),   # ipts    (4,Ipad)
        ],
        out_specs=pl.BlockSpec(memory_space=pltpu.MemorySpace.SMEM),
    )(scal, pairs, ipts)

    euclid_loss = comps[0, 0]
    normal_loss = comps[0, 1]
    intersection_distance = jnp.sqrt(comps[0, 2])
    intersection_camera_distance = jnp.sqrt(comps[0, 3])
    camera_distance = jnp.sqrt(jnp.mean(cam_center_new ** 2))

    error_pull_back = (jax.nn.sigmoid(-40.0 * (camera_distance - intersection_distance))
                       * intersection_camera_distance)
    loss = euclid_loss + weight_normal_loss * normal_loss + error_pull_back
    loss = jnp.where(jnp.isnan(loss), error_pull_back, loss)          # torch NaN fallback

    terms = (euclid_loss, normal_loss, camera_distance, intersection_distance,
             intersection_camera_distance, error_pull_back)
    return loss, terms


# --------------------------------------------------------------------------
# PoseModel equivalent
# --------------------------------------------------------------------------
def _pad_lanes(n):
    return max(128, ((n + 127) // 128) * 128)


class PoseModelPallas:
    """JAX/Pallas port of PoseModel.forward(). Renderer outputs are inputs."""

    def __init__(self, world_points, world_normals, current_points, current_normals,
                 match, intersection_points, r_param_rotation, t_param_translation,
                 weight_normal_loss=0.1):
        wp = np.asarray(world_points, np.float32)
        wn = np.asarray(world_normals, np.float32)
        cp = np.asarray(current_points, np.float32)
        cn = np.asarray(current_normals, np.float32)
        match = np.asarray(match, np.int64)
        ip = np.asarray(intersection_points, np.float32)

        # --- host-side precompute (review #1): gathers, masks, counts -------
        # pair validity: torch only inspects the x component of the current pts
        pair_valid = ~np.isnan(cp[match[:, 1], 0])
        if int(pair_valid.sum()) == 0:
            print('No valid matches in view, turn camera back to object')

        w_m = wp[match[:, 0]]
        c_m = cp[match[:, 1]]
        wn_m = wn[match[:, 0]]
        cn_m = cn[match[:, 1]]

        el = (w_m - c_m) ** 2
        emask = pair_valid[:, None] & ~np.isnan(el)                    # (M,3)
        euclid_count = int(emask.sum())

        dot = (wn_m * cn_m).sum(1)
        denom = (np.maximum(np.linalg.norm(wn_m, axis=1), 1e-8)
                 * np.maximum(np.linalg.norm(cn_m, axis=1), 1e-8))
        nl = 1.0 - dot / denom
        nmask = pair_valid & ~np.isnan(nl)                             # (M,)
        normal_count = int(nmask.sum())

        M = match.shape[0]
        Mpad = _pad_lanes(M)
        pairs = np.zeros((16, Mpad), np.float32)
        pairs[0:3, :M] = np.nan_to_num(w_m).T
        pairs[3:6, :M] = np.nan_to_num(c_m).T
        pairs[6:9, :M] = np.nan_to_num(wn_m).T
        pairs[9:12, :M] = np.nan_to_num(cn_m).T
        pairs[12:15, :M] = emask.T.astype(np.float32)
        pairs[15, :M] = nmask.astype(np.float32)

        nI = ip.shape[0]
        Ipad = _pad_lanes(nI)
        ipts = np.zeros((4, Ipad), np.float32)
        ipts[0:3, :nI] = ip.T        # NaN (if any) propagates, as in torch
        ipts[3, :nI] = 1.0

        self.pairs = jnp.asarray(pairs)
        self.ipts = jnp.asarray(ipts)
        self.r_param_rotation = jnp.asarray(r_param_rotation, jnp.float32)
        self.t_param_translation = jnp.asarray(t_param_translation, jnp.float32)
        self.weight_normal_loss = float(weight_normal_loss)
        self.last_terms = None

        # NaN sentinel reproduces torch's empty-selection mean() -> NaN, which
        # then triggers the loss-NaN fallback to the pull-back term.
        inv_e = (1.0 / euclid_count) if euclid_count > 0 else float('nan')
        inv_n = (1.0 / normal_count) if normal_count > 0 else float('nan')
        inv_i = 1.0 / float(nI * 3)

        # --- single jitted forward (review #2/#3): constants baked in -------
        self._forward_jit = jax.jit(functools.partial(
            _pose_forward,
            inv_euclid_count=inv_e,
            inv_normal_count=inv_n,
            inv_ip_elems=inv_i,
            weight_normal_loss=self.weight_normal_loss,
        ))

    def forward(self):
        loss, terms = self._forward_jit(self.r_param_rotation,
                                        self.t_param_translation,
                                        self.pairs, self.ipts)
        self.last_terms = terms
        return loss, self.r_param_rotation, self.t_param_translation


# --------------------------------------------------------------------------
# Pure-numpy reference (mirrors the torch code line-by-line) for the check
# --------------------------------------------------------------------------
def _np_rodrigues(rvec):
    theta = float(np.linalg.norm(rvec))
    k = rvec / max(theta, 1e-12)
    K = np.array([[0.0, -k[2], k[1]],
                  [k[2], 0.0, -k[0]],
                  [-k[1], k[0], 0.0]], dtype=np.float64)
    return np.eye(3) + np.sin(theta) * K + (1.0 - np.cos(theta)) * (K @ K)


def _np_look_at_rotation(cam_pos):
    at = np.zeros(3); up = np.array([0.0, 1.0, 0.0])
    def norm(v, eps=1e-5):
        return v / max(np.linalg.norm(v), eps)
    z = norm(at - cam_pos)
    x = norm(np.cross(up, z))
    y = norm(np.cross(z, x))
    if np.all(np.abs(x) < 5e-3):
        x = norm(np.cross(y, z))
    return np.stack([x, y, z], axis=1)        # columns = axes


def _np_reference(world_pts, world_nrm, cur_pts, cur_nrm, match, inter_pts,
                  r_param, t_param, weight_normal):
    wp = np.asarray(world_pts, np.float64); wn = np.asarray(world_nrm, np.float64)
    cp = np.asarray(cur_pts, np.float64);   cn = np.asarray(cur_nrm, np.float64)
    ip = np.asarray(inter_pts, np.float64)
    r = np.asarray(r_param, np.float64)[0]; t = np.asarray(t_param, np.float64)[0]

    R = _np_rodrigues(r)
    cam_center = -(t @ R.T)
    R_pto = _np_look_at_rotation(cam_center)
    cam_center_new = -(t @ R_pto)

    pair_valid = ~np.isnan(cp[match[:, 1], 0])
    mw = match[:, 0][pair_valid]; mc = match[:, 1][pair_valid]

    el = (wp[mw] - cp[mc]) ** 2
    euclid = el[~np.isnan(el)].mean() if el.size else np.nan
    a = wn[mw]; b = cn[mc]
    dot = (a * b).sum(1)
    denom = (np.maximum(np.linalg.norm(a, axis=1), 1e-8)
             * np.maximum(np.linalg.norm(b, axis=1), 1e-8))
    nl = 1.0 - dot / denom
    normal = nl[~np.isnan(nl)].mean() if nl.size else np.nan

    inter_d = np.sqrt((ip ** 2).mean())
    cam_d = np.sqrt((cam_center_new ** 2).mean())
    icd = np.sqrt(((ip - cam_center_new[None]) ** 2).mean())
    epb = 1.0 / (1.0 + np.exp(40.0 * (cam_d - inter_d))) * icd
    loss = euclid + weight_normal * normal + epb
    if np.isnan(loss):
        loss = epb
    return dict(loss=loss, euclid=euclid, normal=normal, cam_d=cam_d,
                inter_d=inter_d, icd=icd, epb=epb)


# --------------------------------------------------------------------------
if __name__ == "__main__":
    key = jax.random.PRNGKey(0)
    k1, k2, k3, k4, k5, k6 = jax.random.split(key, 6)

    n_world, n_match, n_inter = 64, 48, 16

    world_points = np.array(jax.random.uniform(k1, (n_world, 3), minval=-1.0, maxval=1.0),
                            np.float32)
    world_normals = np.array(jax.random.normal(k2, (n_world, 3)), np.float32)
    world_normals /= np.linalg.norm(world_normals, axis=1, keepdims=True)

    # Stand-in for the inverse renderer's current-view point cloud / normals:
    # the world cloud with noise; some rays miss the mesh -> NaN rows.
    current_points = world_points + 0.05 * np.array(jax.random.normal(k3, (n_world, 3)),
                                                    np.float32)
    current_normals = np.array(jax.random.normal(k4, (n_world, 3)), np.float32)
    current_normals /= np.linalg.norm(current_normals, axis=1, keepdims=True)
    current_points[5] = np.nan       # missed rays -> invalid matched pairs
    current_points[17] = np.nan
    current_points[30] = np.nan
    current_normals[24] = np.nan     # bad normal on an otherwise valid pair
    world_points[0, 1] = np.nan      # NaN world coordinate -> element-level mask

    match = np.stack([np.arange(n_match) % n_world,
                      (np.arange(n_match) * 7 + 3) % n_world], axis=1).astype(np.int32)

    # Stand-in for the second renderer call (image-centre ray intersections).
    intersection_points = np.array(
        jax.random.uniform(k5, (n_inter, 3), minval=-2.0, maxval=2.0), np.float32)

    r_param = 0.1 * jax.random.normal(k6, (1, 3), dtype=jnp.float32)
    t_param = jnp.array([[0.05, -0.03, 2.0]], dtype=jnp.float32)

    model = PoseModelPallas(world_points, world_normals, current_points,
                            current_normals, match, intersection_points,
                            r_param, t_param, weight_normal_loss=0.1)
    loss, r_out, t_out = model.forward()
    jax.block_until_ready((loss, r_out, t_out))

    ref = _np_reference(world_points, world_normals, current_points, current_normals,
                        match, intersection_points, np.array(r_param), np.array(t_param),
                        0.1)

    # Tolerances deliberately accommodate the EUP approximate reciprocal used
    # for the cosine-similarity denominator (review #4).
    e, nrm, cd, idist, icd, epb = [float(v) for v in model.last_terms]
    np.testing.assert_allclose(float(loss), ref["loss"], rtol=1e-2, atol=2e-3)
    np.testing.assert_allclose(e, ref["euclid"], rtol=1e-4, atol=1e-5)
    np.testing.assert_allclose(nrm, ref["normal"], rtol=1e-2, atol=1e-2)
    np.testing.assert_allclose(cd, ref["cam_d"], rtol=1e-4, atol=1e-5)
    np.testing.assert_allclose(idist, ref["inter_d"], rtol=1e-4, atol=1e-5)
    np.testing.assert_allclose(icd, ref["icd"], rtol=1e-4, atol=1e-5)
    np.testing.assert_allclose(epb, ref["epb"], rtol=1e-3, atol=1e-4)

    print("KERNEL_OK")
</pallas_src>

<mosaic_0001>
module attributes {stable_mosaic.version = 11 : i64} {
  func.func @_pose_loss_kernel(%arg0: memref<1x8xf32, #tpu.memory_space<smem>>, %arg1: memref<16x128xf32, #tpu.memory_space<vmem>>, %arg2: memref<4x128xf32, #tpu.memory_space<vmem>>, %arg3: memref<1x4xf32, #tpu.memory_space<smem>>) attributes {dimension_semantics = [], scalar_prefetch = 0 : i64, scratch_operands = 0 : i64, tpu.core_type = #tpu.core_type<tc>} {
    %c0 = arith.constant 0 : index
    %c0_0 = arith.constant 0 : index
    %0 = vector.load %arg1[%c0, %c0_0] : memref<16x128xf32, #tpu.memory_space<vmem>>, vector<1x128xf32>
    %c3 = arith.constant 3 : index
    %c0_1 = arith.constant 0 : index
    %1 = vector.load %arg1[%c3, %c0_1] : memref<16x128xf32, #tpu.memory_space<vmem>>, vector<1x128xf32>
    %2 = arith.subf %0, %1 : vector<1x128xf32>
    %c1 = arith.constant 1 : index
    %c0_2 = arith.constant 0 : index
    %3 = vector.load %arg1[%c1, %c0_2] : memref<16x128xf32, #tpu.memory_space<vmem>>, vector<1x128xf32>
    %c4 = arith.constant 4 : index
    %c0_3 = arith.constant 0 : index
    %4 = vector.load %arg1[%c4, %c0_3] : memref<16x128xf32, #tpu.memory_space<vmem>>, vector<1x128xf32>
    %5 = arith.subf %3, %4 : vector<1x128xf32>
    %c2 = arith.constant 2 : index
    %c0_4 = arith.constant 0 : index
    %6 = vector.load %arg1[%c2, %c0_4] : memref<16x128xf32, #tpu.memory_space<vmem>>, vector<1x128xf32>
    %c5 = arith.constant 5 : index
    %c0_5 = arith.constant 0 : index
    %7 = vector.load %arg1[%c5, %c0_5] : memref<16x128xf32, #tpu.memory_space<vmem>>, vector<1x128xf32>
    %8 = arith.subf %6, %7 : vector<1x128xf32>
    %9 = arith.mulf %2, %2 : vector<1x128xf32>
    %c12 = arith.constant 12 : index
    %c0_6 = arith.constant 0 : index
    %10 = vector.load %arg1[%c12, %c0_6] : memref<16x128xf32, #tpu.memory_space<vmem>>, vector<1x128xf32>
    %11 = arith.mulf %9, %10 : vector<1x128xf32>
    %12 = arith.mulf %5, %5 : vector<1x128xf32>
    %c13 = arith.constant 13 : index
    %c0_7 = arith.constant 0 : index
    %13 = vector.load %arg1[%c13, %c0_7] : memref<16x128xf32, #tpu.memory_space<vmem>>, vector<1x128xf32>
    %14 = arith.mulf %12, %13 : vector<1x128xf32>
    %15 = arith.addf %11, %14 : vector<1x128xf32>
    %16 = arith.mulf %8, %8 : vector<1x128xf32>
    %c14 = arith.constant 14 : index
    %c0_8 = arith.constant 0 : index
    %17 = vector.load %arg1[%c14, %c0_8] : memref<16x128xf32, #tpu.memory_space<vmem>>, vector<1x128xf32>
    %18 = arith.mulf %16, %17 : vector<1x128xf32>
    %19 = arith.addf %15, %18 : vector<1x128xf32>
    %20 = vector.shape_cast %19 : vector<1x128xf32> to vector<1x1x128xf32>
    %cst = arith.constant dense<0.000000e+00> : vector<1xf32>
    %21 = vector.multi_reduction <add>, %20, %cst [1, 2] : vector<1x1x128xf32> to vector<1xf32>
    %22 = vector.shape_cast %21 : vector<1xf32> to vector<1x1x1xf32>
    %23 = vector.extract %22[0, 0, 0] : f32 from vector<1x1x1xf32>
    %c0_9 = arith.constant 0 : index
    %c3_10 = arith.constant 3 : index
    %24 = memref.load %arg0[%c0_9, %c3_10] : memref<1x8xf32, #tpu.memory_space<smem>>
    %25 = arith.mulf %23, %24 : f32
    %c0_11 = arith.constant 0 : index
    %c0_12 = arith.constant 0 : index
    %26 = memref.load %arg3[%c0_11, %c0_12] : memref<1x4xf32, #tpu.memory_space<smem>>
    memref.store %25, %arg3[%c0_11, %c0_12] : memref<1x4xf32, #tpu.memory_space<smem>>
    %c6 = arith.constant 6 : index
    %c0_13 = arith.constant 0 : index
    %27 = vector.load %arg1[%c6, %c0_13] : memref<16x128xf32, #tpu.memory_space<vmem>>, vector<1x128xf32>
    %c7 = arith.constant 7 : index
    %c0_14 = arith.constant 0 : index
    %28 = vector.load %arg1[%c7, %c0_14] : memref<16x128xf32, #tpu.memory_space<vmem>>, vector<1x128xf32>
    %c8 = arith.constant 8 : index
    %c0_15 = arith.constant 0 : index
    %29 = vector.load %arg1[%c8, %c0_15] : memref<16x128xf32, #tpu.memory_space<vmem>>, vector<1x128xf32>
    %c9 = arith.constant 9 : index
    %c0_16 = arith.constant 0 : index
    %30 = vector.load %arg1[%c9, %c0_16] : memref<16x128xf32, #tpu.memory_space<vmem>>, vector<1x128xf32>
    %c10 = arith.constant 10 : index
    %c0_17 = arith.constant 0 : index
    %31 = vector.load %arg1[%c10, %c0_17] : memref<16x128xf32, #tpu.memory_space<vmem>>, vector<1x128xf32>
    %c11 = arith.constant 11 : index
    %c0_18 = arith.constant 0 : index
    %32 = vector.load %arg1[%c11, %c0_18] : memref<16x128xf32, #tpu.memory_space<vmem>>, vector<1x128xf32>
    %33 = arith.mulf %27, %30 : vector<1x128xf32>
    %34 = arith.mulf %28, %31 : vector<1x128xf32>
    %35 = arith.addf %33, %34 : vector<1x128xf32>
    %36 = arith.mulf %29, %32 : vector<1x128xf32>
    %37 = arith.addf %35, %36 : vector<1x128xf32>
    %38 = arith.mulf %27, %27 : vector<1x128xf32>
    %39 = arith.mulf %28, %28 : vector<1x128xf32>
    %40 = arith.addf %38, %39 : vector<1x128xf32>
    %41 = arith.mulf %29, %29 : vector<1x128xf32>
    %42 = arith.addf %40, %41 : vector<1x128xf32>
    %43 = math.sqrt %42 : vector<1x128xf32>
    %44 = arith.mulf %30, %30 : vector<1x128xf32>
    %45 = arith.mulf %31, %31 : vector<1x128xf32>
    %46 = arith.addf %44, %45 : vector<1x128xf32>
    %47 = arith.mulf %32, %32 : vector<1x128xf32>
    %48 = arith.addf %46, %47 : vector<1x128xf32>
    %49 = math.sqrt %48 : vector<1x128xf32>
    %cst_19 = arith.constant 9.99999993E-9 : f32
    %50 = vector.broadcast %cst_19 : f32 to vector<1x128xf32>
    %51 = arith.maximumf %43, %50 : vector<1x128xf32>
    %cst_20 = arith.constant 9.99999993E-9 : f32
    %52 = vector.broadcast %cst_20 : f32 to vector<1x128xf32>
    %53 = arith.maximumf %49, %52 : vector<1x128xf32>
    %54 = arith.mulf %51, %53 : vector<1x128xf32>
    %55 = tpu.reciprocal %54 {approx = true} : vector<1x128xf32> -> vector<1x128xf32>
    %56 = arith.mulf %37, %55 : vector<1x128xf32>
    %cst_21 = arith.constant 1.000000e+00 : f32
    %57 = vector.broadcast %cst_21 : f32 to vector<1x128xf32>
    %58 = arith.subf %57, %56 : vector<1x128xf32>
    %c15 = arith.constant 15 : index
    %c0_22 = arith.constant 0 : index
    %59 = vector.load %arg1[%c15, %c0_22] : memref<16x128xf32, #tpu.memory_space<vmem>>, vector<1x128xf32>
    %60 = arith.mulf %58, %59 : vector<1x128xf32>
    %61 = vector.shape_cast %60 : vector<1x128xf32> to vector<1x1x128xf32>
    %cst_23 = arith.constant dense<0.000000e+00> : vector<1xf32>
    %62 = vector.multi_reduction <add>, %61, %cst_23 [1, 2] : vector<1x1x128xf32> to vector<1xf32>
    %63 = vector.shape_cast %62 : vector<1xf32> to vector<1x1x1xf32>
    %64 = vector.extract %63[0, 0, 0] : f32 from vector<1x1x1xf32>
    %c0_24 = arith.constant 0 : index
    %c4_25 = arith.constant 4 : index
    %65 = memref.load %arg0[%c0_24, %c4_25] : memref<1x8xf32, #tpu.memory_space<smem>>
    %66 = arith.mulf %64, %65 : f32
    %c0_26 = arith.constant 0 : index
    %c1_27 = arith.constant 1 : index
    %67 = memref.load %arg3[%c0_26, %c1_27] : memref<1x4xf32, #tpu.memory_space<smem>>
    memref.store %66, %arg3[%c0_26, %c1_27] : memref<1x4xf32, #tpu.memory_space<smem>>
    %c0_28 = arith.constant 0 : index
    %c0_29 = arith.constant 0 : index
    %68 = vector.load %arg2[%c0_28, %c0_29] : memref<4x128xf32, #tpu.memory_space<vmem>>, vector<1x128xf32>
    %c1_30 = arith.constant 1 : index
    %c0_31 = arith.constant 0 : index
    %69 = vector.load %arg2[%c1_30, %c0_31] : memref<4x128xf32, #tpu.memory_space<vmem>>, vector<1x128xf32>
    %c2_32 = arith.constant 2 : index
    %c0_33 = arith.constant 0 : index
    %70 = vector.load %arg2[%c2_32, %c0_33] : memref<4x128xf32, #tpu.memory_space<vmem>>, vector<1x128xf32>
    %c3_34 = arith.constant 3 : index
    %c0_35 = arith.constant 0 : index
    %71 = vector.load %arg2[%c3_34, %c0_35] : memref<4x128xf32, #tpu.memory_space<vmem>>, vector<1x128xf32>
    %72 = arith.mulf %68, %68 : vector<1x128xf32>
    %73 = arith.mulf %69, %69 : vector<1x128xf32>
    %74 = arith.addf %72, %73 : vector<1x128xf32>
    %75 = arith.mulf %70, %70 : vector<1x128xf32>
    %76 = arith.addf %74, %75 : vector<1x128xf32>
    %77 = arith.mulf %76, %71 : vector<1x128xf32>
    %78 = vector.shape_cast %77 : vector<1x128xf32> to vector<1x1x128xf32>
    %cst_36 = arith.constant dense<0.000000e+00> : vector<1xf32>
    %79 = vector.multi_reduction <add>, %78, %cst_36 [1, 2] : vector<1x1x128xf32> to vector<1xf32>
    %80 = vector.shape_cast %79 : vector<1xf32> to vector<1x1x1xf32>
    %81 = vector.extract %80[0, 0, 0] : f32 from vector<1x1x1xf32>
    %c0_37 = arith.constant 0 : index
    %c5_38 = arith.constant 5 : index
    %82 = memref.load %arg0[%c0_37, %c5_38] : memref<1x8xf32, #tpu.memory_space<smem>>
    %83 = arith.mulf %81, %82 : f32
    %c0_39 = arith.constant 0 : index
    %c2_40 = arith.constant 2 : index
    %84 = memref.load %arg3[%c0_39, %c2_40] : memref<1x4xf32, #tpu.memory_space<smem>>
    memref.store %83, %arg3[%c0_39, %c2_40] : memref<1x4xf32, #tpu.memory_space<smem>>
    %c0_41 = arith.constant 0 : index
    %c0_42 = arith.constant 0 : index
    %85 = memref.load %arg0[%c0_41, %c0_42] : memref<1x8xf32, #tpu.memory_space<smem>>
    %86 = vector.broadcast %85 : f32 to vector<1x128xf32>
    %87 = arith.subf %68, %86 : vector<1x128xf32>
    %c0_43 = arith.constant 0 : index
    %c1_44 = arith.constant 1 : index
    %88 = memref.load %arg0[%c0_43, %c1_44] : memref<1x8xf32, #tpu.memory_space<smem>>
    %89 = vector.broadcast %88 : f32 to vector<1x128xf32>
    %90 = arith.subf %69, %89 : vector<1x128xf32>
    %c0_45 = arith.constant 0 : index
    %c2_46 = arith.constant 2 : index
    %91 = memref.load %arg0[%c0_45, %c2_46] : memref<1x8xf32, #tpu.memory_space<smem>>
    %92 = vector.broadcast %91 : f32 to vector<1x128xf32>
    %93 = arith.subf %70, %92 : vector<1x128xf32>
    %94 = arith.mulf %87, %87 : vector<1x128xf32>
    %95 = arith.mulf %90, %90 : vector<1x128xf32>
    %96 = arith.addf %94, %95 : vector<1x128xf32>
    %97 = arith.mulf %93, %93 : vector<1x128xf32>
    %98 = arith.addf %96, %97 : vector<1x128xf32>
    %99 = arith.mulf %98, %71 : vector<1x128xf32>
    %100 = vector.shape_cast %99 : vector<1x128xf32> to vector<1x1x128xf32>
    %cst_47 = arith.constant dense<0.000000e+00> : vector<1xf32>
    %101 = vector.multi_reduction <add>, %100, %cst_47 [1, 2] : vector<1x1x128xf32> to vector<1xf32>
    %102 = vector.shape_cast %101 : vector<1xf32> to vector<1x1x1xf32>
    %103 = vector.extract %102[0, 0, 0] : f32 from vector<1x1x1xf32>
    %c0_48 = arith.constant 0 : index
    %c5_49 = arith.constant 5 : index
    %104 = memref.load %arg0[%c0_48, %c5_49] : memref<1x8xf32, #tpu.memory_space<smem>>
    %105 = arith.mulf %103, %104 : f32
    %c0_50 = arith.constant 0 : index
    %c3_51 = arith.constant 3 : index
    %106 = memref.load %arg3[%c0_50, %c3_51] : memref<1x4xf32, #tpu.memory_space<smem>>
    memref.store %105, %arg3[%c0_50, %c3_51] : memref<1x4xf32, #tpu.memory_space<smem>>
    return
  }
}

</mosaic_0001>

<llo_original>
// kernel: _pose_forward.1
$region0: #{_pose_forward.1}
  #allocation0 [shape = 'u32[]', space=smem, size = 0x4, offset = 0x4, fixed_abs, tag = 'smem constant byte address 0x4 - core index']
  #allocation1 [shape = 'u32[144,128]{1,0:T(1,128)}', space=vmem, size = 0x12000, scoped, tag = 'internal scratch']
  %s0 = inlined_call_operand.vmem [shape: f32[1,8], index: 0, kind: input, shape index: {}]
  %s1 = inlined_call_operand.vmem [shape: f32[16,128], index: 1, kind: input, shape index: {}]
  %s2 = inlined_call_operand.vmem [shape: f32[4,128], index: 2, kind: input, shape index: {}]
  %s3 = inlined_call_operand.vmem [shape: f32[1,4], index: 3, kind: output, shape index: {}]
  %s4 = sld [smem:[#allocation0]]
  $region26: #{_pose_forward.1} parent=0
    _
  %s6 = ssub.s32 1, %s4
  %s7 = scalar_select 0, %s6, %s4
  $region1: #{_pose_forward.1} parent=0
    #allocation2 [shape = 'u8[512]{0}', space=smem, size = 0x200, scoped, tag = 'input window, operand 0, single buffered']
    #allocation3 [shape = 's32[1]{0}', space=sflag, size = 0x4, scoped, tag = 'scoped memory for _pose_forward.1']
    #allocation4 [shape = 's32[1]{0}', space=sflag, size = 0x4, scoped, tag = 'scoped memory for _pose_forward.1']
    #allocation5 [shape = 'u8[512]{0}', space=smem, size = 0x200, scoped, tag = 'output window, operand 0, single buffered']
    %8 = vsyncpa [#allocation3], 0
    %9 = vsyncpa [#allocation4], 0
    // Predicated region
    $region2: #{_pose_forward.1} parent=1 // pred_check
      _
    $region3: #{_pose_forward.1} parent=1 // pred_check_branch
      %11 = sbr.rel (0) target = $region5
    $region4: #{_pose_forward.1} parent=1 // pred_region
      %s13 = ssub.s32 16, 16
      %14 = vsyncadd [#allocation3], %s13
      %s16 = sshll.u32 %s0, 4
      %s17 = int_to_ptr.vmem [resolvable:$true] %s16
      %19 = dma.vmem_to_smem %s17, 16, [#allocation2], [#allocation3]
    $region5: #{_pose_forward.1} parent=1 // pred_fallthru
      _
    // Predicated region
    $region6: #{_pose_forward.1} parent=1 // pred_check
      _
    $region7: #{_pose_forward.1} parent=1 // pred_check_branch
      %21 = sbr.rel (0) target = $region9
    $region8: #{_pose_forward.1} parent=1 // pred_region
      _
    $region9: #{_pose_forward.1} parent=1 // pred_fallthru
      _
    // Predicated region
    $region10: #{_pose_forward.1} parent=1 // pred_check
      _
    $region11: #{_pose_forward.1} parent=1 // pred_check_branch
      %23 = sbr.rel (0) target = $region13
    $region12: #{_pose_forward.1} parent=1 // pred_region
      _
    $region13: #{_pose_forward.1} parent=1 // pred_fallthru
      _
    // Predicated region
    $region14: #{_pose_forward.1} parent=1 // pred_check
      _
    $region15: #{_pose_forward.1} parent=1 // pred_check_branch
      %25 = sbr.rel (0) target = $region17
    $region16: #{_pose_forward.1} parent=1 // pred_region
      %26 = dma.done [#allocation3], 16
    $region17: #{_pose_forward.1} parent=1 // pred_fallthru
      _
    %27 = sfence
    %v28 = vld [vmem:[%s1] sm:$0x1]
    %v29 = vld [vmem:[%s1 + $0x3] sm:$0x1]
    %v30 = vsub.f32 %v28, %v29
    %v31 = vld [vmem:[%s1 + $0x1] sm:$0x1]
    %v32 = vld [vmem:[%s1 + $0x4] sm:$0x1]
    %v33 = vsub.f32 %v31, %v32
    %v34 = vld [vmem:[%s1 + $0x2] sm:$0x1]
    %v35 = vld [vmem:[%s1 + $0x5] sm:$0x1]
    %v36 = vsub.f32 %v34, %v35
    %v37 = vmul.f32 %v30, %v30
    %v38 = vld [vmem:[%s1 + $0xc] sm:$0x1]
    %v39 = vmul.f32 %v37, %v38
    %v40 = vmul.f32 %v33, %v33
    %v41 = vld [vmem:[%s1 + $0xd] sm:$0x1]
    %v42 = vmul.f32 %v40, %v41
    %v43 = vadd.f32 %v39, %v42
    %v44 = vmul.f32 %v36, %v36
    %v45 = vld [vmem:[%s1 + $0xe] sm:$0x1]
    %v46 = vmul.f32 %v44, %v45
    %v47 = vadd.f32 %v43, %v46
    %vm48 = vcmask 1040384
    %v49 = vsel %vm48, %v47, 0.0
    %50 = vadd.xlane.f32.xlu0 %v49
    %v51 = vpop.xlane.xlu0 %50
    %v52 = vrot.slane %v51, 4
    %v53 = vadd.f32 %v51, %v52
    %v54 = vrot.slane %v53, 2
    %v55 = vadd.f32 %v53, %v54
    %v56 = vrot.slane %v55, 1
    %v57 = vadd.f32 %v55, %v56
    %s58 = vtos %v57
    %s59 = sld [smem:[#allocation2 + $0x3]]
    %s60 = smul.f32 %s58, %s59
    %s61 = scalar_lea.smem [#allocation5], 0
    %62 = sst [smem:[%s61]] %s60
    %v63 = vld [vmem:[%s1 + $0x6] sm:$0x1]
    %v64 = vld [vmem:[%s1 + $0x7] sm:$0x1]
    %v65 = vld [vmem:[%s1 + $0x8] sm:$0x1]
    %v66 = vld [vmem:[%s1 + $0x9] sm:$0x1]
    %v67 = vld [vmem:[%s1 + $0xa] sm:$0x1]
    %v68 = vld [vmem:[%s1 + $0xb] sm:$0x1]
    %v69 = vmul.f32 %v63, %v66
    %v70 = vmul.f32 %v64, %v67
    %v71 = vadd.f32 %v69, %v70
    %v72 = vmul.f32 %v65, %v68
    %v73 = vadd.f32 %v71, %v72
    %v74 = vmul.f32 %v63, %v63
    %v75 = vmul.f32 %v64, %v64
    %v76 = vadd.f32 %v74, %v75
    %v77 = vmul.f32 %v65, %v65
    %v78 = vadd.f32 %v76, %v77
    %v79 = vrsqrt.pop %v78
    %v80 = vmul.f32 %v78, %v79
    %vm81 = vcmp.eq.f32.partialorder %v78, inf
    %v82 = vsel %vm81, %v78, %v80
    %vm83 = vcmp.eq.f32.partialorder %v78, 0.0
    %v84 = vand.u32 %v78, 2147483648
    %v85 = vsel %vm83, %v84, %v82
    %v86 = vmul.f32 %v66, %v66
    %v87 = vmul.f32 %v67, %v67
    %v88 = vadd.f32 %v86, %v87
    %v89 = vmul.f32 %v68, %v68
    %v90 = vadd.f32 %v88, %v89
    %v91 = vrsqrt.pop %v90
    %v92 = vmul.f32 %v90, %v91
    %vm93 = vcmp.eq.f32.partialorder %v90, inf
    %v94 = vsel %vm93, %v90, %v92
    %vm95 = vcmp.eq.f32.partialorder %v90, 0.0
    %v96 = vand.u32 %v90, 2147483648
    %v97 = vsel %vm95, %v96, %v94
    %v98 = vmax.f32 %v85, 1e-08
    %v99 = vmax.f32 %v97, 1e-08
    %v100 = vmul.f32 %v98, %v99
    %v101 = vrcp.pop %v100
    %v102 = vmul.f32 %v73, %v101
    %v103 = vsub.f32 1.0, %v102
    %v104 = vld [vmem:[%s1 + $0xf] sm:$0x1]
    %v105 = vmul.f32 %v103, %v104
    %v106 = vsel %vm48, %v105, 0.0
    %107 = vadd.xlane.f32.xlu0 %v106
    %v108 = vpop.xlane.xlu0 %107
    %v109 = vrot.slane %v108, 4
    %v110 = vadd.f32 %v108, %v109
    %v111 = vrot.slane %v110, 2
    %v112 = vadd.f32 %v110, %v111
    %v113 = vrot.slane %v112, 1
    %v114 = vadd.f32 %v112, %v113
    %s115 = vtos %v114
    %s116 = sld [smem:[#allocation2 + $0x4]]
    %s117 = smul.f32 %s115, %s116
    %s118 = scalar_lea.smem [#allocation5], 1
    %119 = sst [smem:[%s118]] %s117
    %v120 = vld [vmem:[%s2] sm:$0x1]
    %v121 = vld [vmem:[%s2 + $0x1] sm:$0x1]
    %v122 = vld [vmem:[%s2 + $0x2] sm:$0x1]
    %v123 = vld [vmem:[%s2 + $0x3] sm:$0x1]
    %v124 = vmul.f32 %v120, %v120
    %v125 = vmul.f32 %v121, %v121
    %v126 = vadd.f32 %v124, %v125
    %v127 = vmul.f32 %v122, %v122
    %v128 = vadd.f32 %v126, %v127
    %v129 = vmul.f32 %v128, %v123
    %v130 = vsel %vm48, %v129, 0.0
    %131 = vadd.xlane.f32.xlu0 %v130
    %v132 = vpop.xlane.xlu0 %131
    %v133 = vrot.slane %v132, 4
    %v134 = vadd.f32 %v132, %v133
    %v135 = vrot.slane %v134, 2
    %v136 = vadd.f32 %v134, %v135
    %v137 = vrot.slane %v136, 1
    %v138 = vadd.f32 %v136, %v137
    %s139 = vtos %v138
    %s140 = sld [smem:[#allocation2 + $0x5]]
    %s141 = smul.f32 %s139, %s140
    %s142 = scalar_lea.smem [#allocation5], 2
    %143 = sst [smem:[%s142]] %s141
    %s144 = sld [smem:[#allocation2]]
    %v145 = vstv %s144
    %v146 = vsub.f32 %v120, %v145
    %s147 = sld [smem:[#allocation2 + $0x1]]
    %v148 = vstv %s147
    %v149 = vsub.f32 %v121, %v148
    %s150 = sld [smem:[#allocation2 + $0x2]]
    %v151 = vstv %s150
    %v152 = vsub.f32 %v122, %v151
    %v153 = vmul.f32 %v146, %v146
    %v154 = vmul.f32 %v149, %v149
    %v155 = vadd.f32 %v153, %v154
    %v156 = vmul.f32 %v152, %v152
    %v157 = vadd.f32 %v155, %v156
    %v158 = vmul.f32 %v157, %v123
    %v159 = vsel %vm48, %v158, 0.0
    %160 = vadd.xlane.f32.xlu0 %v159
    %v161 = vpop.xlane.xlu0 %160
    %v162 = vrot.slane %v161, 4
    %v163 = vadd.f32 %v161, %v162
    %v164 = vrot.slane %v163, 2
    %v165 = vadd.f32 %v163, %v164
    %v166 = vrot.slane %v165, 1
    %v167 = vadd.f32 %v165, %v166
    %s168 = vtos %v167
    %s169 = sld [smem:[#allocation2 + $0x5]]
    %s170 = smul.f32 %s168, %s169
    %s171 = scalar_lea.smem [#allocation5], 3
    %172 = sst [smem:[%s171]] %s170
    // Predicated region
    $region18: #{_pose_forward.1} parent=1 // pred_check
      _
    $region19: #{_pose_forward.1} parent=1 // pred_check_branch
      %174 = sbr.rel (0) target = $region21
    $region20: #{_pose_forward.1} parent=1 // pred_region
      %s176 = ssub.s32 16, 16
      %177 = vsyncadd [#allocation4], %s176
      %s179 = sshll.u32 %s3, 4
      %s180 = int_to_ptr.vmem [resolvable:$true] %s179
      %182 = dma.smem_to_vmem [#allocation5], 16, %s180, [#allocation4]
    $region21: #{_pose_forward.1} parent=1 // pred_fallthru
      _
    // Predicated region
    $region22: #{_pose_forward.1} parent=1 // pred_check
      _
    $region23: #{_pose_forward.1} parent=1 // pred_check_branch
      %184 = sbr.rel (0) target = $region25
    $region24: #{_pose_forward.1} parent=1 // pred_region
      %185 = dma.done [#allocation4], 16
    $region25: #{_pose_forward.1} parent=1 // pred_fallthru
      _
    %186 = sfence
    %187 = vsyncpa [#allocation3], 1
    %188 = vsyncpa [#allocation4], 1

</llo_original>
